<compile_context>
chip_gen: v6e
topology: v6e:2x2x1
jax: 0.10.0
libtpu: 0.0.40
codegen_flags: <defaults>
</compile_context>

<pallas_src>
import jax
import jax.numpy as jnp
from jax.experimental import pallas as pl
from jax.experimental.pallas import tpu as pltpu


def _network_kernel(g_ref, wet_ref, wdt_ref, o_ref):
    # g_ref  : (C_in, LT)        bf16  graph-aggregated input, lane-dense
    # wet_ref: (Hd, C_in)        bf16  encoder weight, transposed (resident)
    # wdt_ref: (C_out_pad, Hd)   bf16  decoder weight, transposed, zero-padded
    # o_ref  : (C_out_pad, LT)   bf16  lane-dense output slab

    # encoder channel expansion: (Hd, C_in) @ (C_in, LT), f32 accumulation.
    h = jnp.dot(wet_ref[...], g_ref[...], preferred_element_type=jnp.float32)

    # ReLU in f32 then cast (portable: v5e has no bf16 VPU).
    # TODO(synk): on v6e/v7x, casting to bf16 *before* the ReLU halves VPU /
    # vreg traffic on the (Hd, LT) intermediate; gate on chip generation.
    h = jnp.maximum(h, 0.0).astype(wdt_ref.dtype)

    # decoder 1x1 conv: (C_out_pad, Hd) @ (Hd, LT), f32 accumulation.
    y = jnp.dot(wdt_ref[...], h, preferred_element_type=jnp.float32)
    o_ref[...] = y.astype(o_ref.dtype)


def network_forward(x_nctv, A, W_enc, W_dec, *, lane_tile=2048,
                    compute_dtype=jnp.bfloat16):
    """x_nctv: (N, C_in, T, V) float32 (PyTorch NCHW convention, H=T, W=V).

    Returns (N, C_out, T, V) in `compute_dtype` (bf16 by default to halve
    HBM writeback on this memory-bound layer).
    """
    N, C_in, T, V = x_nctv.shape
    Hd = W_enc.shape[1]
    C_out = W_dec.shape[1]
    cd = compute_dtype

    # ---- graph aggregation hoisted out of the kernel (exact reorder, done on
    # the raw C_in channels => ~Hd/C_in fewer MACs than aggregating after the
    # channel expansion).  One small bf16 einsum in the wrapper; the Pallas
    # kernel then only sees a flat, lane-dense L = T*V axis.
    g = jnp.einsum("nctw,wv->nctv", x_nctv.astype(cd), A.astype(cd),
                   preferred_element_type=jnp.float32).astype(cd)

    # ---- lane-axis tiling: pad L to a multiple of the tile (itself a
    # multiple of 128), so any V (e.g. 25) tiles cleanly.
    L = T * V
    C_out_pad = ((C_out + 7) // 8) * 8            # full 8-sublane output vregs

    LT = max(128, (min(int(lane_tile), pl.cdiv(L, 128) * 128) // 128) * 128)

    def _vmem_est(lt):
        bf2, f4 = 2, 4
        return (2 * C_in * lt * bf2                      # double-buffered in
                + 2 * C_out_pad * lt * bf2               # double-buffered out
                + 2 * (Hd * C_in + C_out_pad * Hd) * bf2  # resident weights
                + Hd * lt * (f4 + bf2)                   # h f32 + bf16 copy
                + C_out_pad * lt * f4)                   # y f32 before cast

    # Keep per-step VMEM well below every generation's default scoped limit
    # (v5e 16 MiB, v6e/v7x 32 MiB) and v7x's 64 MiB physical VMEM, so the
    # default 2-deep pipeline never spills or OOMs.
    VMEM_BUDGET = 10 << 20
    while LT > 128 and _vmem_est(LT) > VMEM_BUDGET:
        LT = max(128, (LT // 2 // 128) * 128)

    L_pad = pl.cdiv(L, LT) * LT
    n_l = L_pad // LT

    # Guarantee >= 2 independent grid steps when possible so both v7x
    # TensorCores get work even at N == 1.
    if N * n_l < 2 and LT >= 256:
        LT = max(128, (LT // 2 // 128) * 128)
        L_pad = pl.cdiv(L, LT) * LT
        n_l = L_pad // LT

    g_flat = g.reshape(N, C_in, L)
    if L_pad != L:
        g_flat = jnp.pad(g_flat, ((0, 0), (0, 0), (0, L_pad - L)))

    wet = jnp.transpose(W_enc).astype(cd)                 # (Hd, C_in)
    wdt = jnp.transpose(W_dec).astype(cd)                 # (C_out, Hd)
    if C_out_pad != C_out:
        wdt = jnp.pad(wdt, ((0, C_out_pad - C_out), (0, 0)))

    # Note: with K = C_in / Hd small, this layer is HBM-bound; MXU roofline is
    # not the target.  bf16 in/out + tiling are the levers that matter.
    flops = 2 * N * L * Hd * (C_in + C_out_pad)
    bytes_accessed = (g_flat.size * 2 + wet.size * 2 + wdt.size * 2
                      + N * C_out_pad * L_pad * 2)

    # TODO(synk): if per-tile compute stays tiny at real shapes, consider
    # pipeline_mode=pl.Buffered(3) on the input/output specs to cover exposed
    # DMA latency (cheap now that the output is bf16).
    out_flat = pl.pallas_call(
        _network_kernel,
        out_shape=jax.ShapeDtypeStruct((N, C_out_pad, L_pad), cd),
        grid_spec=pltpu.PrefetchScalarGridSpec(
            num_scalar_prefetch=0,
            grid=(N, n_l),
            in_specs=[
                pl.BlockSpec((None, C_in, LT), lambda n, li: (n, 0, li)),
                pl.BlockSpec((Hd, C_in), lambda n, li: (0, 0)),
                pl.BlockSpec((C_out_pad, Hd), lambda n, li: (0, 0)),
            ],
            out_specs=pl.BlockSpec((None, C_out_pad, LT),
                                   lambda n, li: (n, 0, li)),
        ),
        compiler_params=pltpu.CompilerParams(
            dimension_semantics=("parallel", "parallel")),
        cost_estimate=pl.CostEstimate(
            flops=flops, transcendentals=0, bytes_accessed=bytes_accessed),
    )(g_flat, wet, wdt)

    # Drop padding; reshapes are free (no transpose).
    return out_flat[:, :C_out, :L].reshape(N, C_out, T, V)


def network_reference(x_nctv, A, W_enc, W_dec):
    """Pure-JAX f32 reference of the same encoder/decoder composition."""
    h = jnp.einsum("nctv,cd->ndtv", x_nctv, W_enc)
    h = jnp.einsum("ndtw,wv->ndtv", h, A)
    h = jnp.maximum(h, 0.0)
    y = jnp.einsum("ndtv,do->notv", h, W_dec)
    return y


if __name__ == "__main__":
    key = jax.random.PRNGKey(0)
    k_x, k_a, k_we, k_wd = jax.random.split(key, 4)

    # Small shapes: batch=2, in-channels=4, time=16, vertices=16, hidden=32
    N, C_in, T, V, Hd, C_out = 2, 4, 16, 16, 32, 4

    x = jax.random.normal(k_x, (N, C_in, T, V), dtype=jnp.float32)

    # Deterministic synthetic parameters (no checkpoint loading).
    A = jax.random.uniform(k_a, (V, V), dtype=jnp.float32) / V   # soft adjacency
    W_enc = jax.random.normal(k_we, (C_in, Hd), dtype=jnp.float32) * 0.1
    W_dec = jax.random.normal(k_wd, (Hd, C_out), dtype=jnp.float32) * 0.1

    out = network_forward(x, A, W_enc, W_dec)
    out = jax.block_until_ready(out)

    ref = network_reference(x, A, W_enc, W_dec)
    assert out.shape == (N, C_out, T, V)
    # bf16 operands/accumulation round-trips -> loosened tolerance.
    err = jnp.max(jnp.abs(out.astype(jnp.float32) - ref))
    assert jnp.allclose(out.astype(jnp.float32), ref, atol=2e-2, rtol=2e-2), \
        float(err)

    print("KERNEL_OK")
</pallas_src>

<mosaic_0001>
module attributes {stable_mosaic.version = 11 : i64} {
  func.func @_network_kernel(%arg0: i32, %arg1: i32, %arg2: memref<1x4x256xbf16, #tpu.memory_space<vmem>>, %arg3: memref<32x4xbf16, #tpu.memory_space<vmem>>, %arg4: memref<8x32xbf16, #tpu.memory_space<vmem>>, %arg5: memref<1x8x256xbf16, #tpu.memory_space<vmem>>) attributes {dimension_semantics = [#tpu.dimension_semantics<parallel>, #tpu.dimension_semantics<parallel>], iteration_bounds = array<i64: 2, 1>, scalar_prefetch = 0 : i64, scratch_operands = 0 : i64, tpu.core_type = #tpu.core_type<tc>, window_params = [{transform_indices = @transform_0, window_bounds = array<i64: 1, 4, 256>}, {pipeline_mode = #tpu.pipeline_mode<synchronous>, transform_indices = @transform_1, window_bounds = array<i64: 32, 4>}, {pipeline_mode = #tpu.pipeline_mode<synchronous>, transform_indices = @transform_2, window_bounds = array<i64: 8, 32>}, {transform_indices = @transform_3, window_bounds = array<i64: 1, 8, 256>}]} {
    %c0 = arith.constant 0 : index
    %c0_0 = arith.constant 0 : index
    %0 = vector.load %arg3[%c0, %c0_0] : memref<32x4xbf16, #tpu.memory_space<vmem>>, vector<32x4xbf16>
    %c0_1 = arith.constant 0 : index
    %c0_2 = arith.constant 0 : index
    %c0_3 = arith.constant 0 : index
    %1 = vector.load %arg2[%c0_1, %c0_2, %c0_3] : memref<1x4x256xbf16, #tpu.memory_space<vmem>>, vector<1x4x256xbf16>
    %2 = vector.shape_cast %1 : vector<1x4x256xbf16> to vector<4x256xbf16>
    %cst = arith.constant dense<0.000000e+00> : vector<32x256xf32>
    %3 = tpu.matmul %0, %2, %cst {dimension_numbers = #tpu.dot_dimension_numbers<[1], [0], [0], [1], [0, 0, 1, 1], [], []>} : vector<32x4xbf16>, vector<4x256xbf16>, vector<32x256xf32> -> vector<32x256xf32>
    %cst_4 = arith.constant 0.000000e+00 : f32
    %4 = vector.broadcast %cst_4 : f32 to vector<32x256xf32>
    %5 = arith.maximumf %3, %4 : vector<32x256xf32>
    %6 = arith.truncf %5 : vector<32x256xf32> to vector<32x256xbf16>
    %c0_5 = arith.constant 0 : index
    %c0_6 = arith.constant 0 : index
    %7 = vector.load %arg4[%c0_5, %c0_6] : memref<8x32xbf16, #tpu.memory_space<vmem>>, vector<8x32xbf16>
    %cst_7 = arith.constant dense<0.000000e+00> : vector<8x256xf32>
    %8 = tpu.matmul %7, %6, %cst_7 {dimension_numbers = #tpu.dot_dimension_numbers<[1], [0], [0], [1], [0, 0, 1, 1], [], []>} : vector<8x32xbf16>, vector<32x256xbf16>, vector<8x256xf32> -> vector<8x256xf32>
    %9 = arith.truncf %8 : vector<8x256xf32> to vector<8x256xbf16>
    %c0_8 = arith.constant 0 : index
    %c0_9 = arith.constant 0 : index
    %c0_10 = arith.constant 0 : index
    %10 = vector.load %arg5[%c0_8, %c0_9, %c0_10] : memref<1x8x256xbf16, #tpu.memory_space<vmem>>, vector<1x8x256xbf16>
    %11 = vector.shape_cast %10 : vector<1x8x256xbf16> to vector<8x256xbf16>
    %12 = vector.shape_cast %9 : vector<8x256xbf16> to vector<1x8x256xbf16>
    tpu.vector_store %arg5[%c0_8, %c0_9, %c0_10], %12 {strides = array<i32>} : memref<1x8x256xbf16, #tpu.memory_space<vmem>>, vector<1x8x256xbf16>,
    return
  }
  func.func @transform_0(%arg0: i32, %arg1: i32) -> (i32, i32, i32) {
    %c0_i32 = arith.constant 0 : i32
    %c0_i32_0 = arith.constant 0 : i32
    return %arg0, %c0_i32, %arg1 : i32, i32, i32
  }
  func.func @transform_1(%arg0: i32, %arg1: i32) -> (i32, i32) {
    %c0_i32 = arith.constant 0 : i32
    %c0_i32_0 = arith.constant 0 : i32
    %c0_i32_1 = arith.constant 0 : i32
    return %c0_i32, %c0_i32_0 : i32, i32
  }
  func.func @transform_2(%arg0: i32, %arg1: i32) -> (i32, i32) {
    %c0_i32 = arith.constant 0 : i32
    %c0_i32_0 = arith.constant 0 : i32
    %c0_i32_1 = arith.constant 0 : i32
    return %c0_i32, %c0_i32_0 : i32, i32
  }
  func.func @transform_3(%arg0: i32, %arg1: i32) -> (i32, i32, i32) {
    %c0_i32 = arith.constant 0 : i32
    %c0_i32_0 = arith.constant 0 : i32
    return %arg0, %c0_i32, %arg1 : i32, i32, i32
  }
}

</mosaic_0001>

<llo_original>
// kernel: tpu_custom_call.1
$region0: #{tpu_custom_call.1}
  #allocation0 [shape = 'u32[]', space=smem, size = 0x4, offset = 0x4, fixed_abs, tag = 'smem constant byte address 0x4 - core index']
  #allocation1 [shape = 'u32[144,128]{1,0:T(1,128)}', space=vmem, size = 0x12000, scoped, tag = 'internal scratch']
  %s0 = inlined_call_operand.vmem [shape: bf16[2,4,256], index: 0, kind: input, shape index: {}]
  %s1 = inlined_call_operand.vmem [shape: bf16[32,4], index: 1, kind: input, shape index: {}]
  %s2 = inlined_call_operand.vmem [shape: bf16[8,32], index: 2, kind: input, shape index: {}]
  %s3 = inlined_call_operand.hbm [shape: bf16[2,8,256], index: 3, kind: output, shape index: {}]
  %s4 = sld [smem:[#allocation0]]
  $region45: #{tpu_custom_call.1} parent=0
    _
  %s6 = ssub.s32 1, %s4
  %s7 = scalar_select 0, %s6, %s4
  $region1: #{tpu_custom_call.1} parent=0
    #allocation2 [shape = 'u8[8192]{0}', space=vmem, size = 0x2000, scoped, tag = 'output window, operand 0']
    #allocation3 [shape = 's32[2]{0}', space=sflag, size = 0x8, scoped, tag = 'scoped memory for tpu_custom_call.1']
    %8 = vsyncpa [#allocation3], 0
    %s9 = scalar_lea.sflag [#allocation3], 1
    %10 = vsyncpa %s9, 0
    loop: start=0, step=1, limit=4
    $region2: #{tpu_custom_call.1} parent=1 // loop_pre_header
      _
    $region3: #{tpu_custom_call.1} parent=1 // loop_header
      %s12 = sphi 0, %s16
      %p13 = scmp.ge.s32.totalorder %s12, 4
      %s19 = sphi 0, %s31
      %s20 = sphi 0, %s27
      %s21 = sphi 0, %s19
      %s22 = sphi 0, %s20
      %s23 = sphi 0, %s21
      %s24 = sphi 0, %s22
      %s36 = sphi 0, %s38
      %s39 = sphi 0, %s36
      %s40 = sphi 0, %s39
      %s56 = sphi 0, %s40
      %s60 = sphi 0, %s60
      %s62 = sphi 0, %s60
      %s63 = sphi 0, %s62
      %s77 = sphi 0, %s63
      %s81 = sphi 0, %s81
      %s83 = sphi 0, %s81
      %s84 = sphi 0, %s83
      %s98 = sphi 0, %s84
      %s106 = sphi 0, %s108
      %s109 = sphi 0, %s106
      %s110 = sphi 0, %s109
      %s126 = sphi 0, %s110
    $region4: #{tpu_custom_call.1} parent=1 // loop_header_branch
      %15 = sbr.rel (%p13) target = $region8
    $region5: #{tpu_custom_call.1} parent=1 // loop_body
      %s17 = ssub.s32 %s12, 1
      %s18 = ssub.s32 %s12, 2
      %s25 = sadd.s32 1, %s20
      %p26 = scmp.ge.s32.totalorder %s25, 1
      %s27 = scalar_select %p26, 0, %s25
      %s28 = sadd.s32 1, %s19
      %s29 = scalar_select %p26, %s28, %s19
      %p30 = scmp.ge.s32.totalorder %s29, 2
      %s31 = scalar_select %p30, 0, %s29
      %s32 = ssub.s32 %s19, %s31
      %s33 = ssub.s32 %s20, %s27
      %s34 = sor.u32 %s32, %s33
      %p35 = scmp.eq.s32.totalorder %s34, 0
      %s37 = sadd.s32 %s36, 1
      %s38 = scalar_select %p35, %s36, %s37
      %p41 = pneg %p35
      %p42 = scmp.eq.s32.totalorder %s12, 1
      %p43 = por %p41, %p42
      %p44 = scmp.ne.s32.totalorder %s36, %s39
      %p45 = scmp.eq.s32.totalorder %s12, 0
      %p46 = por %p44, %p45
      %p47 = scmp.ne.s32.totalorder %s36, %s39
      %p48 = scmp.eq.s32.totalorder %s17, 1
      %p49 = por %p47, %p48
      %p50 = scmp.ne.s32.totalorder %s39, %s40
      %p51 = scmp.eq.s32.totalorder %s17, 0
      %p52 = por %p50, %p51
      %p53 = scmp.ne.s32.totalorder %s39, %s40
      %p54 = scmp.eq.s32.totalorder %s18, 1
      %p55 = por %p53, %p54
      %p57 = scmp.ne.s32.totalorder %s40, %s56
      %p58 = scmp.eq.s32.totalorder %s18, 0
      %p59 = por %p57, %p58
      %s61 = sadd.s32 %s60, 1
      %p64 = scmp.eq.s32.totalorder %s12, 1
      %p65 = scmp.ne.s32.totalorder %s60, %s62
      %p66 = scmp.eq.s32.totalorder %s12, 0
      %p67 = por %p65, %p66
      %p68 = scmp.ne.s32.totalorder %s60, %s62
      %p69 = scmp.eq.s32.totalorder %s17, 1
      %p70 = por %p68, %p69
      %p71 = scmp.ne.s32.totalorder %s62, %s63
      %p72 = scmp.eq.s32.totalorder %s17, 0
      %p73 = por %p71, %p72
      %p74 = scmp.ne.s32.totalorder %s62, %s63
      %p75 = scmp.eq.s32.totalorder %s18, 1
      %p76 = por %p74, %p75
      %p78 = scmp.ne.s32.totalorder %s63, %s77
      %p79 = scmp.eq.s32.totalorder %s18, 0
      %p80 = por %p78, %p79
      %s82 = sadd.s32 %s81, 1
      %p85 = scmp.eq.s32.totalorder %s12, 1
      %p86 = scmp.ne.s32.totalorder %s81, %s83
      %p87 = scmp.eq.s32.totalorder %s12, 0
      %p88 = por %p86, %p87
      %p89 = scmp.ne.s32.totalorder %s81, %s83
      %p90 = scmp.eq.s32.totalorder %s17, 1
      %p91 = por %p89, %p90
      %p92 = scmp.ne.s32.totalorder %s83, %s84
      %p93 = scmp.eq.s32.totalorder %s17, 0
      %p94 = por %p92, %p93
      %p95 = scmp.ne.s32.totalorder %s83, %s84
      %p96 = scmp.eq.s32.totalorder %s18, 1
      %p97 = por %p95, %p96
      %p99 = scmp.ne.s32.totalorder %s84, %s98
      %p100 = scmp.eq.s32.totalorder %s18, 0
      %p101 = por %p99, %p100
      %s102 = ssub.s32 %s19, %s31
      %s103 = ssub.s32 %s20, %s27
      %s104 = sor.u32 %s102, %s103
      %p105 = scmp.eq.s32.totalorder %s104, 0
      %s107 = sadd.s32 %s106, 1
      %s108 = scalar_select %p105, %s106, %s107
      %p111 = pneg %p105
      %p112 = scmp.eq.s32.totalorder %s12, 1
      %p113 = por %p111, %p112
      %p114 = scmp.ne.s32.totalorder %s106, %s109
      %p115 = scmp.eq.s32.totalorder %s12, 0
      %p116 = por %p114, %p115
      %p117 = scmp.ne.s32.totalorder %s106, %s109
      %p118 = scmp.eq.s32.totalorder %s17, 1
      %p119 = por %p117, %p118
      %p120 = scmp.ne.s32.totalorder %s109, %s110
      %p121 = scmp.eq.s32.totalorder %s17, 0
      %p122 = por %p120, %p121
      %p123 = scmp.ne.s32.totalorder %s109, %s110
      %p124 = scmp.eq.s32.totalorder %s18, 1
      %p125 = por %p123, %p124
      %p127 = scmp.ne.s32.totalorder %s110, %s126
      %p128 = scmp.eq.s32.totalorder %s18, 0
      %p129 = por %p127, %p128
      %p130 = scmp.le.s32.totalorder 1, %s12
      %p131 = scmp.lt.s32.totalorder %s12, 3
      %p132 = pnand %p130, %p131
      %p133 = pneg %p132
      // Predicated region
      $region9: #{tpu_custom_call.1} parent=5 // pred_check
        _
      $region10: #{tpu_custom_call.1} parent=5 // pred_check_branch
        %135 = sbr.rel (%p132) target = $region12
      $region11: #{tpu_custom_call.1} parent=5 // pred_region
        %s136 = ssub.s32 %s12, 1
        // Predicated region
        $region13: #{tpu_custom_call.1} parent=11 // pred_check
          %p137 = pneg %p73
        $region14: #{tpu_custom_call.1} parent=11 // pred_check_branch
          %139 = sbr.rel (%p137) target = $region16
        $region15: #{tpu_custom_call.1} parent=11 // pred_region
          _
        $region16: #{tpu_custom_call.1} parent=11 // pred_fallthru
          _
        // Predicated region
        $region17: #{tpu_custom_call.1} parent=11 // pred_check
          %p140 = pneg %p94
        $region18: #{tpu_custom_call.1} parent=11 // pred_check_branch
          %142 = sbr.rel (%p140) target = $region20
        $region19: #{tpu_custom_call.1} parent=11 // pred_region
          _
        $region20: #{tpu_custom_call.1} parent=11 // pred_fallthru
          _
      $region12: #{tpu_custom_call.1} parent=5 // pred_fallthru
        _
      %p143 = scmp.lt.s32.totalorder %s12, 2
      // Predicated region
      $region21: #{tpu_custom_call.1} parent=5 // pred_check
        %p144 = pneg %p143
      $region22: #{tpu_custom_call.1} parent=5 // pred_check_branch
        %146 = sbr.rel (%p144) target = $region24
      $region23: #{tpu_custom_call.1} parent=5 // pred_region
        // Predicated region
        $region25: #{tpu_custom_call.1} parent=23 // pred_check
          %p147 = pneg %p46
        $region26: #{tpu_custom_call.1} parent=23 // pred_check_branch
          %149 = sbr.rel (%p147) target = $region28
        $region27: #{tpu_custom_call.1} parent=23 // pred_region
          %s150 = smul.u32 2, %s20
          %p151 = scmp.lt.s32.totalorder %s19, 1
          %s152 = scalar_select %p151, %s19, 1
          %p153 = scmp.lt.s32.totalorder %s150, 1
          %s154 = scalar_select %p153, %s150, 1
          %s155 = smul.addr %s152, 2
          %s156 = sadd.s32 %s154, %s155
          %s157 = smul.addr %s156, 2
          %s158 = scalar_lea.vmem %s0, %s157
          %s159 = smul.u32 2, %s20
        $region28: #{tpu_custom_call.1} parent=23 // pred_fallthru
          _
      $region24: #{tpu_custom_call.1} parent=5 // pred_fallthru
        _
      %p160 = scmp.le.s32.totalorder 1, %s12
      %p161 = scmp.lt.s32.totalorder %s12, 3
      %p162 = pnand %p160, %p161
      %p163 = pneg %p162
      // Predicated region
      $region29: #{tpu_custom_call.1} parent=5 // pred_check
        _
      $region30: #{tpu_custom_call.1} parent=5 // pred_check_branch
        %165 = sbr.rel (%p162) target = $region32
      $region31: #{tpu_custom_call.1} parent=5 // pred_region
        %s166 = ssub.s32 %s12, 1
        %s167 = smul.u32 2, %s22
        %p168 = scmp.lt.s32.totalorder %s21, 1
        %s169 = scalar_select %p168, %s21, 1
        %p170 = scmp.lt.s32.totalorder %s167, 1
        %s171 = scalar_select %p170, %s167, 1
        %s172 = smul.addr %s169, 2
        %s173 = sadd.s32 %s171, %s172
        %s174 = smul.addr %s173, 2
        %s175 = scalar_lea.vmem %s0, %s174
        %p176 = pneg %p52
        %p177 = pneg %p49
        %p178 = pneg %p73
        %p179 = pneg %p70
        %p180 = pneg %p94
        %p181 = pneg %p91
        %p182 = pneg %p122
        %p183 = pneg %p119
        %s184 = sand.u32 %s109, 1
        %s185 = scalar_lea.sflag [#allocation3], %s184
        %s186 = sand.u32 %s109, 1
        %s187 = smul.addr %s186, 8
        %s188 = scalar_lea.vmem [#allocation2], %s187
        %s189 = smul.u32 2, %s22
        %p190 = scmp.lt.s32.totalorder %s21, 1
        %s191 = scalar_select %p190, %s21, 1
        %p192 = scmp.lt.s32.totalorder %s189, 1
        %s193 = scalar_select %p192, %s189, 1
        %s194 = smul.addr %s191, 2
        %s195 = sadd.s32 %s193, %s194
        %s196 = smul.addr %s195, 2
        %s197 = scalar_lea.vmem %s0, %s196
        %s198 = smul.u32 2, %s22
        %s199 = smul.u32 2, %s22
        %v201 = vld [vmem:[%s1] sm:$0xf]
        %v202 = vld [vmem:[%s1 + $0x4] sm:$0xf]
        %v203 = vld [vmem:[%s1 + $0x8] sm:$0xf]
        %v204 = vld [vmem:[%s1 + $0xc] sm:$0xf]
        %v205 = vld [vmem:[%s197] sm:$0xf]
        %v210 = vunpack.c.l.b16 %v201
        %v211 = vunpack.c.l.b16 %v202
        %v212 = vunpack.c.l.b16 %v203
        %v213 = vunpack.c.l.b16 %v204
        %v214 = vpack.c.b16 %v211, %v210
        %v215 = vpack.c.b16 %v213, %v212
        %v218 = vunpack.c.l.s4 1983009808
        %v219 = vunpack.c.0.s8 %v218
        %v220 = vlaneseq
        %v221 = vshrl.u32 %v220, 7
        %v222 = vsub.s32 %v219, %v221
        %v223 = vrot.slane %v205, %v222
        %v224 = vcombine.high %v223, %v223
        %vm225 = vcmask 31744
        %v227 = vsel %vm225, %v214, 0
        %v230 = vsel %vm225, %v215, 0
        %vm232 = vcmask 1041408
        %v234 = vsel %vm232, %v223, 0
        %v237 = vsel %vm232, %v224, 0
        %239 = vmatprep.subr.bf16.mxu0 0
        %240 = vmatpush1.bf16.msra.mxu0 0
        %241 = vmatprep.subr.bf16.mxu0 0
        %242 = vmatpush1.bf16.msra.mxu0 0
        %243 = vmatprep.subr.bf16.mxu0 0
        %244 = vmatpush1.bf16.msra.mxu0 0
        %245 = vmatprep.subr.bf16.mxu0 0
        %246 = vmatpush1.bf16.msra.mxu0 0
        %247 = vmatprep.subr.bf16.mxu0 0
        %248 = vmatpush1.bf16.msra.mxu0 0
        %249 = vmatprep.subr.bf16.mxu0 0
        %250 = vmatpush1.bf16.msra.mxu0 0
        %251 = vmatprep.subr.bf16.mxu0 0
        %252 = vmatpush1.bf16.msra.mxu0 0
        %253 = vmatprep.subr.bf16.mxu0 %v237
        %254 = vmatpush1.bf16.msra.mxu0 %v234
        %255 = vmatprep.subr.bf16.mxu0 0
        %256 = vmatpush2.bf16.msra.mxu0 0
        %257 = vmatprep.subr.bf16.mxu0 0
        %258 = vmatpush2.bf16.msra.mxu0 0
        %259 = vmatprep.subr.bf16.mxu0 0
        %260 = vmatpush2.bf16.msra.mxu0 0
        %261 = vmatprep.subr.bf16.mxu0 0
        %262 = vmatpush2.bf16.msra.mxu0 0
        %263 = vmatprep.subr.bf16.mxu0 0
        %264 = vmatpush2.bf16.msra.mxu0 0
        %265 = vmatprep.subr.bf16.mxu0 0
        %266 = vmatpush2.bf16.msra.mxu0 0
        %267 = vmatprep.subr.bf16.mxu0 0
        %268 = vmatpush2.bf16.msra.mxu0 0
        %269 = vmatprep.subr.bf16.mxu0 0
        %270 = vmatpush2.bf16.msra.mxu0 0
        %271 = vmatprep.mubr.bf16.mxu0 0
        %272 = vmatmul.mubr.bf16.gmra.mxu0 %v227
        %v273 = vpop.f32.mrf.mxu0
        %v274 = vadd.f32 0.0, %v273
        %v275 = vpop.f32.mrf.mxu0
        %v276 = vadd.f32 0.0, %v275
        %v277 = vpop.f32.mrf.mxu0
        %v278 = vadd.f32 0.0, %v277
        %v279 = vpop.f32.mrf.mxu0
        %v280 = vadd.f32 0.0, %v279
        %281 = vmatprep.mubr.bf16.mxu0 0
        %282 = vmatmul.mubr.bf16.gmra.mxu0 %v230
        %v283 = vpop.f32.mrf.mxu0
        %v284 = vadd.f32 0.0, %v283
        %v285 = vpop.f32.mrf.mxu0
        %v286 = vadd.f32 0.0, %v285
        %v287 = vpop.f32.mrf.mxu0
        %v288 = vadd.f32 0.0, %v287
        %v289 = vpop.f32.mrf.mxu0
        %v290 = vadd.f32 0.0, %v289
        %291 = vdwg.mxu0
        %v292 = vmax.f32 %v274, 0.0
        %v293 = vmax.f32 %v276, 0.0
        %v294 = vmax.f32 %v278, 0.0
        %v295 = vmax.f32 %v280, 0.0
        %v296 = vmax.f32 %v284, 0.0
        %v297 = vmax.f32 %v286, 0.0
        %v298 = vmax.f32 %v288, 0.0
        %v299 = vmax.f32 %v290, 0.0
        %v300 = vpack.c.bf16 %v294, %v292
        %v301 = vpack.c.bf16 %v295, %v293
        %v302 = vpack.c.bf16 %v298, %v296
        %v303 = vpack.c.bf16 %v299, %v297
        %v304 = vld [vmem:[%s2] sm:$0xf]
        %vm305 = vcmask 261120
        %v307 = vsel %vm305, %v304, 0
        %309 = vmatprep.subr.bf16.mxu0 0
        %310 = vmatpush1.bf16.msra.mxu0 0
        %311 = vmatprep.subr.bf16.mxu0 0
        %312 = vmatpush1.bf16.msra.mxu0 0
        %313 = vmatprep.subr.bf16.mxu0 0
        %314 = vmatpush1.bf16.msra.mxu0 0
        %315 = vmatprep.subr.bf16.mxu0 0
        %316 = vmatpush1.bf16.msra.mxu0 0
        %317 = vmatprep.subr.bf16.mxu0 0
        %318 = vmatpush1.bf16.msra.mxu0 0
        %319 = vmatprep.subr.bf16.mxu0 0
        %320 = vmatpush1.bf16.msra.mxu0 0
        %321 = vmatprep.subr.bf16.mxu0 %v303
        %322 = vmatpush1.bf16.msra.mxu0 %v302
        %323 = vmatprep.subr.bf16.mxu0 %v301
        %324 = vmatpush1.bf16.msra.mxu0 %v300
        %325 = vmatprep.subr.bf16.mxu0 0
        %326 = vmatpush2.bf16.msra.mxu0 0
        %327 = vmatprep.subr.bf16.mxu0 0
        %328 = vmatpush2.bf16.msra.mxu0 0
        %329 = vmatprep.subr.bf16.mxu0 0
        %330 = vmatpush2.bf16.msra.mxu0 0
        %331 = vmatprep.subr.bf16.mxu0 0
        %332 = vmatpush2.bf16.msra.mxu0 0
        %333 = vmatprep.subr.bf16.mxu0 0
        %334 = vmatpush2.bf16.msra.mxu0 0
        %335 = vmatprep.subr.bf16.mxu0 0
        %336 = vmatpush2.bf16.msra.mxu0 0
        %337 = vmatprep.subr.bf16.mxu0 0
        %338 = vmatpush2.bf16.msra.mxu0 0
        %339 = vmatprep.subr.bf16.mxu0 0
        %340 = vmatpush2.bf16.msra.mxu0 0
        %341 = vmatprep.mubr.bf16.mxu0 0
        %342 = vmatmul.mubr.bf16.gmra.mxu0 %v307
        %v343 = vpop.f32.mrf.mxu0
        %v344 = vadd.f32 0.0, %v343
        %v345 = vpop.f32.mrf.mxu0
        %v346 = vadd.f32 0.0, %v345
        %v347 = vpop.f32.mrf.mxu0
        %v348 = vpop.f32.mrf.mxu0
        %349 = vdwg.mxu0
        %v350 = vpack.c.bf16 %v344, %v344
        %v351 = vpack.c.bf16 %v346, %v346
        %v354 = vunpack.c.l.b16 %v350
        %v355 = vunpack.c.l.b16 %v351
        %v356 = vpack.c.b16 %v355, %v354
        %358 = vst [vmem:[%s188] sm:$0xff] %v356
        %s359 = sand.u32 %s109, 1
        %s360 = scalar_lea.sflag [#allocation3], %s359
        %s361 = sand.u32 %s109, 1
        %s362 = smul.addr %s361, 8
        %s363 = scalar_lea.vmem [#allocation2], %s362
        // Predicated region
        $region33: #{tpu_custom_call.1} parent=31 // pred_check
          %p364 = pneg %p119
        $region34: #{tpu_custom_call.1} parent=31 // pred_check_branch
          %366 = sbr.rel (%p364) target = $region36
        $region35: #{tpu_custom_call.1} parent=31 // pred_region
          %s367 = smul.u32 2, %s22
          %s369 = ssub.s32 128, 128
          %370 = vsyncadd %s360, %s369
          %s371 = smul.addr %s21, 2
          %s372 = sadd.s32 %s367, %s371
          %s373 = smul.addr %s372, 64
          %s374 = scalar_lea.hbm %s3, %s373
          %s376 = sshll.u32 %s363, 4
          %s377 = int_to_ptr.vmem [resolvable:$true] %s376
          %379 = dma.vmem_to_hbm [thread:$0]  %s377, 128, %s374, %s360
        $region36: #{tpu_custom_call.1} parent=31 // pred_fallthru
          _
      $region32: #{tpu_custom_call.1} parent=5 // pred_fallthru
        _
      %p380 = scmp.le.s32.totalorder 2, %s12
      // Predicated region
      $region37: #{tpu_custom_call.1} parent=5 // pred_check
        %p381 = pneg %p380
      $region38: #{tpu_custom_call.1} parent=5 // pred_check_branch
        %383 = sbr.rel (%p381) target = $region40
      $region39: #{tpu_custom_call.1} parent=5 // pred_region
        %s384 = ssub.s32 %s12, 2
        // Predicated region
        $region41: #{tpu_custom_call.1} parent=39 // pred_check
          %p385 = pneg %p125
        $region42: #{tpu_custom_call.1} parent=39 // pred_check_branch
          %387 = sbr.rel (%p385) target = $region44
        $region43: #{tpu_custom_call.1} parent=39 // pred_region
          %s388 = sand.u32 %s110, 1
          %s389 = scalar_lea.sflag [#allocation3], %s388
          %s390 = sand.u32 %s110, 1
          %s391 = smul.addr %s390, 8
          %s392 = scalar_lea.vmem [#allocation2], %s391
          %393 = dma.done %s389, 128
        $region44: #{tpu_custom_call.1} parent=39 // pred_fallthru
          _
      $region40: #{tpu_custom_call.1} parent=5 // pred_fallthru
        _
    $region6: #{tpu_custom_call.1} parent=1 // loop_footer
      %s16 = sadd.s32 1, %s12
    $region7: #{tpu_custom_call.1} parent=1 // loop_footer_branch
      %11 = sbr.rel target = $region3
    $region8: #{tpu_custom_call.1} parent=1 // loop_exit
      _
    %394 = vsyncpa [#allocation3], 1
    %s395 = scalar_lea.sflag [#allocation3], 1
    %396 = vsyncpa %s395, 1

</llo_original>
